<compile_context>
chip_gen: v7x
topology: tpu7x:2x2x1
jax: 0.10.0
libtpu: 0.0.40
codegen_flags: <defaults>
</compile_context>

<pallas_src>
import jax
import jax.numpy as jnp
from jax.experimental import pallas as pl
from jax.experimental.pallas import tpu as pltpu


def _round_up(x, m):
    return ((x + m - 1) // m) * m


def _gconv_kernel(x_ref, m_ref, b_ref, o_ref):
    # x_ref: (1, Cin, TBt, V)   native-layout x tile (no wrapper transpose)
    # m_ref: (Cin, V, VCp)      bf16 fused weight (1/K)*sum_k W[k] (x) A[k], lane-padded
    # b_ref: (1, VCp)           f32 fused bias-through-A term
    # o_ref: (1, TBt, VCp)      lane-dense output tile
    cin = x_ref.shape[1]
    tbt = x_ref.shape[2]
    vcp = o_ref.shape[2]
    acc = jnp.zeros((tbt, vcp), jnp.float32)
    # Cin is small on this fused-weight path; unrolled loop of small MXU
    # matmuls, bf16 inputs with f32 accumulation.
    for i in range(cin):
        xi = x_ref[0, i, :, :].astype(jnp.bfloat16)          # (TBt, V)
        acc = acc + jnp.dot(xi, m_ref[i, :, :],
                            preferred_element_type=jnp.float32)
    o_ref[0, :, :] = (acc + b_ref[...]).astype(o_ref.dtype)


def _pick_t_block(n, t, target_steps=8, max_rows=512):
    """Rows (along T) per tile: 8-aligned, <=512, aiming for >= target_steps grid steps."""
    steps_per_n = max(1, pl.cdiv(target_steps, n))
    tb = pl.cdiv(t, steps_per_n)
    tb = _round_up(max(tb, 8), 8)
    tb = min(tb, max_rows, _round_up(t, 8))
    return tb


def conv_temporal_graphical(x, A, weight, bias, num_adj):
    """x: (N, Cin, T, V); A: (K, V, V); weight: (K*Cout, Cin, 1, 1); bias: (K*Cout,).
    Returns (out (N, Cout, T, V), A)."""
    N, Cin, T, V = x.shape
    K = num_adj
    Cout = weight.shape[0] // K
    VC = V * Cout
    VCp = _round_up(VC, 128)           # lane-dense output columns

    # ---- one-time parameter folding in f32, then bf16 for the MXU ------------
    w = weight.reshape(K, Cout, Cin).astype(jnp.float32)
    b = bias.reshape(K, Cout).astype(jnp.float32)
    a = A.astype(jnp.float32)
    # M3[i, u, c*V+v] = (1/K) * sum_k W[k,c,i] * A[k,v,u]
    m3 = (jnp.einsum("kci,kvu->iucv", w, a) / K).reshape(Cin, V, VC)
    # b_eff[c*V+v]    = (1/K) * sum_k b[k,c] * sum_u A[k,v,u]
    b_eff = (jnp.einsum("kc,kv->cv", b, a.sum(axis=2)) / K).reshape(1, VC)
    if VCp != VC:
        m3 = jnp.pad(m3, ((0, 0), (0, 0), (0, VCp - VC)))
        b_eff = jnp.pad(b_eff, ((0, 0), (0, VCp - VC)))
    m3 = m3.astype(jnp.bfloat16)       # half the resident weight; native MXU rate
    b_eff = b_eff.astype(jnp.float32)  # f32 epilogue

    tb = _pick_t_block(N, T)
    grid_t = pl.cdiv(T, tb)
    t_pad = grid_t * tb                # pad-and-slice rows (output array padded)
    out_dtype = x.dtype

    # VMEM budget: double-buffered x/out tiles (lane-padded) + constant operands.
    lane = 128
    x_tile = Cin * tb * _round_up(V, lane) * x.dtype.itemsize
    o_tile = tb * VCp * jnp.dtype(out_dtype).itemsize
    const = Cin * V * VCp * 2 + VCp * 4
    vmem_limit = int(min(max(2 * (x_tile + o_tile) + 2 * const + (4 << 20),
                             16 << 20), 48 << 20))

    cost = pl.CostEstimate(
        flops=2 * N * T * Cin * V * VC,
        transcendentals=0,
        bytes_accessed=int(x.size * x.dtype.itemsize + m3.size * 2 + b_eff.size * 4
                           + N * t_pad * VCp * jnp.dtype(out_dtype).itemsize),
    )

    out_rows = pl.pallas_call(
        _gconv_kernel,
        out_shape=jax.ShapeDtypeStruct((N, t_pad, VCp), out_dtype),
        grid=(N, grid_t),
        in_specs=[
            pl.BlockSpec((1, Cin, tb, V), lambda n, t: (n, 0, t, 0)),
            pl.BlockSpec((Cin, V, VCp), lambda n, t: (0, 0, 0)),
            pl.BlockSpec((1, VCp), lambda n, t: (0, 0)),
        ],
        out_specs=pl.BlockSpec((1, tb, VCp), lambda n, t: (n, t, 0)),
        compiler_params=pltpu.CompilerParams(
            dimension_semantics=("parallel", "parallel"),
            vmem_limit_bytes=vmem_limit,
        ),
        cost_estimate=cost,
    )(x, m3, b_eff)

    # Remaining wrapper-side layout op: (N, T, Cout, V) -> (N, Cout, T, V).
    out = jnp.transpose(out_rows[:, :T, :VC].reshape(N, T, Cout, V), (0, 2, 1, 3))
    return out.astype(out_dtype), A


def _reference(x, A, weight, bias, K):
    """Pure-JAX (f32) reference mirroring the PyTorch forward."""
    N, Cin, T, V = x.shape
    Cout = weight.shape[0] // K
    w = weight.reshape(K, Cout, Cin)
    b = bias.reshape(K, Cout)
    y = jnp.einsum("kci,nitv->nkctv", w, x) + b[None, :, :, None, None]
    out = jnp.einsum("kvu,nkctu->nctv", A, y) / K
    return out


if __name__ == "__main__":
    key = jax.random.PRNGKey(0)
    N, Cin, T, V = 2, 4, 16, 16
    Cout, K = 8, 3

    k1, k2, k3, k4 = jax.random.split(key, 4)
    x = jax.random.normal(k1, (N, Cin, T, V), dtype=jnp.float32)
    A = jax.random.normal(k2, (K, V, V), dtype=jnp.float32)
    weight = 0.1 * jax.random.normal(k3, (K * Cout, Cin, 1, 1), dtype=jnp.float32)
    bias = 0.1 * jax.random.normal(k4, (K * Cout,), dtype=jnp.float32)

    out, A_out = conv_temporal_graphical(x, A, weight, bias, K)
    out = jax.block_until_ready(out)

    ref = _reference(x, A, weight, bias, K)
    assert out.shape == (N, Cout, T, V), out.shape
    err = float(jnp.max(jnp.abs(out - ref)))
    # bf16 activations/weights with f32 accumulation -> loosened tolerance.
    assert jnp.allclose(out, ref, atol=2e-2, rtol=2e-2), f"mismatch vs reference: {err}"
    assert jnp.array_equal(A_out, A)
    print("KERNEL_OK")
</pallas_src>

<mosaic_0001>
module attributes {stable_mosaic.version = 11 : i64} {
  func.func @_gconv_kernel(%arg0: i32, %arg1: i32, %arg2: memref<1x4x8x16xf32, #tpu.memory_space<vmem>>, %arg3: memref<4x16x128xbf16, #tpu.memory_space<vmem>>, %arg4: memref<1x128xf32, #tpu.memory_space<vmem>>, %arg5: memref<1x8x128xf32, #tpu.memory_space<vmem>>) attributes {dimension_semantics = [#tpu.dimension_semantics<parallel>, #tpu.dimension_semantics<parallel>], iteration_bounds = array<i64: 2, 2>, scalar_prefetch = 0 : i64, scratch_operands = 0 : i64, tpu.core_type = #tpu.core_type<tc>, window_params = [{transform_indices = @transform_0, window_bounds = array<i64: 1, 4, 8, 16>}, {pipeline_mode = #tpu.pipeline_mode<synchronous>, transform_indices = @transform_1, window_bounds = array<i64: 4, 16, 128>}, {pipeline_mode = #tpu.pipeline_mode<synchronous>, transform_indices = @transform_2, window_bounds = array<i64: 1, 128>}, {transform_indices = @transform_3, window_bounds = array<i64: 1, 8, 128>}]} {
    %cst = arith.constant 0.000000e+00 : f32
    %0 = vector.broadcast %cst : f32 to vector<8x128xf32>
    %c0 = arith.constant 0 : index
    %c0_0 = arith.constant 0 : index
    %c0_1 = arith.constant 0 : index
    %c0_2 = arith.constant 0 : index
    %1 = vector.load %arg2[%c0, %c0_0, %c0_1, %c0_2] : memref<1x4x8x16xf32, #tpu.memory_space<vmem>>, vector<1x1x8x16xf32>
    %2 = vector.shape_cast %1 : vector<1x1x8x16xf32> to vector<8x16xf32>
    %3 = arith.truncf %2 : vector<8x16xf32> to vector<8x16xbf16>
    %c0_3 = arith.constant 0 : index
    %c0_4 = arith.constant 0 : index
    %c0_5 = arith.constant 0 : index
    %4 = vector.load %arg3[%c0_3, %c0_4, %c0_5] : memref<4x16x128xbf16, #tpu.memory_space<vmem>>, vector<1x16x128xbf16>
    %5 = vector.shape_cast %4 : vector<1x16x128xbf16> to vector<16x128xbf16>
    %cst_6 = arith.constant dense<0.000000e+00> : vector<8x128xf32>
    %6 = tpu.matmul %3, %5, %cst_6 {dimension_numbers = #tpu.dot_dimension_numbers<[1], [0], [0], [1], [0, 0, 1, 1], [], []>} : vector<8x16xbf16>, vector<16x128xbf16>, vector<8x128xf32> -> vector<8x128xf32>
    %7 = arith.addf %0, %6 : vector<8x128xf32>
    %c0_7 = arith.constant 0 : index
    %c1 = arith.constant 1 : index
    %c0_8 = arith.constant 0 : index
    %c0_9 = arith.constant 0 : index
    %8 = vector.load %arg2[%c0_7, %c1, %c0_8, %c0_9] : memref<1x4x8x16xf32, #tpu.memory_space<vmem>>, vector<1x1x8x16xf32>
    %9 = vector.shape_cast %8 : vector<1x1x8x16xf32> to vector<8x16xf32>
    %10 = arith.truncf %9 : vector<8x16xf32> to vector<8x16xbf16>
    %c1_10 = arith.constant 1 : index
    %c0_11 = arith.constant 0 : index
    %c0_12 = arith.constant 0 : index
    %11 = vector.load %arg3[%c1_10, %c0_11, %c0_12] : memref<4x16x128xbf16, #tpu.memory_space<vmem>>, vector<1x16x128xbf16>
    %12 = vector.shape_cast %11 : vector<1x16x128xbf16> to vector<16x128xbf16>
    %cst_13 = arith.constant dense<0.000000e+00> : vector<8x128xf32>
    %13 = tpu.matmul %10, %12, %cst_13 {dimension_numbers = #tpu.dot_dimension_numbers<[1], [0], [0], [1], [0, 0, 1, 1], [], []>} : vector<8x16xbf16>, vector<16x128xbf16>, vector<8x128xf32> -> vector<8x128xf32>
    %14 = arith.addf %7, %13 : vector<8x128xf32>
    %c0_14 = arith.constant 0 : index
    %c2 = arith.constant 2 : index
    %c0_15 = arith.constant 0 : index
    %c0_16 = arith.constant 0 : index
    %15 = vector.load %arg2[%c0_14, %c2, %c0_15, %c0_16] : memref<1x4x8x16xf32, #tpu.memory_space<vmem>>, vector<1x1x8x16xf32>
    %16 = vector.shape_cast %15 : vector<1x1x8x16xf32> to vector<8x16xf32>
    %17 = arith.truncf %16 : vector<8x16xf32> to vector<8x16xbf16>
    %c2_17 = arith.constant 2 : index
    %c0_18 = arith.constant 0 : index
    %c0_19 = arith.constant 0 : index
    %18 = vector.load %arg3[%c2_17, %c0_18, %c0_19] : memref<4x16x128xbf16, #tpu.memory_space<vmem>>, vector<1x16x128xbf16>
    %19 = vector.shape_cast %18 : vector<1x16x128xbf16> to vector<16x128xbf16>
    %cst_20 = arith.constant dense<0.000000e+00> : vector<8x128xf32>
    %20 = tpu.matmul %17, %19, %cst_20 {dimension_numbers = #tpu.dot_dimension_numbers<[1], [0], [0], [1], [0, 0, 1, 1], [], []>} : vector<8x16xbf16>, vector<16x128xbf16>, vector<8x128xf32> -> vector<8x128xf32>
    %21 = arith.addf %14, %20 : vector<8x128xf32>
    %c0_21 = arith.constant 0 : index
    %c3 = arith.constant 3 : index
    %c0_22 = arith.constant 0 : index
    %c0_23 = arith.constant 0 : index
    %22 = vector.load %arg2[%c0_21, %c3, %c0_22, %c0_23] : memref<1x4x8x16xf32, #tpu.memory_space<vmem>>, vector<1x1x8x16xf32>
    %23 = vector.shape_cast %22 : vector<1x1x8x16xf32> to vector<8x16xf32>
    %24 = arith.truncf %23 : vector<8x16xf32> to vector<8x16xbf16>
    %c3_24 = arith.constant 3 : index
    %c0_25 = arith.constant 0 : index
    %c0_26 = arith.constant 0 : index
    %25 = vector.load %arg3[%c3_24, %c0_25, %c0_26] : memref<4x16x128xbf16, #tpu.memory_space<vmem>>, vector<1x16x128xbf16>
    %26 = vector.shape_cast %25 : vector<1x16x128xbf16> to vector<16x128xbf16>
    %cst_27 = arith.constant dense<0.000000e+00> : vector<8x128xf32>
    %27 = tpu.matmul %24, %26, %cst_27 {dimension_numbers = #tpu.dot_dimension_numbers<[1], [0], [0], [1], [0, 0, 1, 1], [], []>} : vector<8x16xbf16>, vector<16x128xbf16>, vector<8x128xf32> -> vector<8x128xf32>
    %28 = arith.addf %21, %27 : vector<8x128xf32>
    %c0_28 = arith.constant 0 : index
    %c0_29 = arith.constant 0 : index
    %29 = vector.load %arg4[%c0_28, %c0_29] : memref<1x128xf32, #tpu.memory_space<vmem>>, vector<1x128xf32>
    %30 = vector.broadcast %29 : vector<1x128xf32> to vector<8x128xf32>
    %31 = arith.addf %28, %30 : vector<8x128xf32>
    %c0_30 = arith.constant 0 : index
    %c0_31 = arith.constant 0 : index
    %c0_32 = arith.constant 0 : index
    %32 = vector.load %arg5[%c0_30, %c0_31, %c0_32] : memref<1x8x128xf32, #tpu.memory_space<vmem>>, vector<1x8x128xf32>
    %33 = vector.shape_cast %32 : vector<1x8x128xf32> to vector<8x128xf32>
    %34 = vector.shape_cast %31 : vector<8x128xf32> to vector<1x8x128xf32>
    tpu.vector_store %arg5[%c0_30, %c0_31, %c0_32], %34 {strides = array<i32>} : memref<1x8x128xf32, #tpu.memory_space<vmem>>, vector<1x8x128xf32>,
    return
  }
  func.func @transform_0(%arg0: i32, %arg1: i32) -> (i32, i32, i32, i32) {
    %c0_i32 = arith.constant 0 : i32
    %c0_i32_0 = arith.constant 0 : i32
    %c0_i32_1 = arith.constant 0 : i32
    return %arg0, %c0_i32, %arg1, %c0_i32_0 : i32, i32, i32, i32
  }
  func.func @transform_1(%arg0: i32, %arg1: i32) -> (i32, i32, i32) {
    %c0_i32 = arith.constant 0 : i32
    %c0_i32_0 = arith.constant 0 : i32
    %c0_i32_1 = arith.constant 0 : i32
    %c0_i32_2 = arith.constant 0 : i32
    return %c0_i32, %c0_i32_0, %c0_i32_1 : i32, i32, i32
  }
  func.func @transform_2(%arg0: i32, %arg1: i32) -> (i32, i32) {
    %c0_i32 = arith.constant 0 : i32
    %c0_i32_0 = arith.constant 0 : i32
    %c0_i32_1 = arith.constant 0 : i32
    return %c0_i32, %c0_i32_0 : i32, i32
  }
  func.func @transform_3(%arg0: i32, %arg1: i32) -> (i32, i32, i32) {
    %c0_i32 = arith.constant 0 : i32
    %c0_i32_0 = arith.constant 0 : i32
    return %arg0, %arg1, %c0_i32 : i32, i32, i32
  }
}

</mosaic_0001>

<llo_original>
// kernel: tpu_custom_call.1
$region0: #{tpu_custom_call.1}
  #allocation0 [shape = 'u32[]', space=smem, size = 0x4, offset = 0x4, fixed_abs, tag = 'smem constant byte address 0x4 - core index']
  #allocation1 [shape = 'u32[144,128]{1,0:T(1,128)}', space=vmem, size = 0x12000, scoped, tag = 'internal scratch']
  %s0 = inlined_call_operand.hbm [shape: f32[2,4,16,16], index: 0, kind: input, shape index: {}]
  %s1 = inlined_call_operand.hbm [shape: bf16[4,16,128], index: 1, kind: input, shape index: {}]
  %s2 = inlined_call_operand.vmem [shape: f32[1,128], index: 2, kind: input, shape index: {}]
  %s3 = inlined_call_operand.hbm [shape: f32[2,16,128], index: 3, kind: output, shape index: {}]
  %s4 = sld [smem:[#allocation0]]
  $region53: #{tpu_custom_call.1} parent=0
    _
  %s6 = ssub.s32 1, %s4
  %s7 = scalar_select 0, %s6, %s4
  $region1: #{tpu_custom_call.1} parent=0
    #allocation2 [shape = 'u8[32768]{0}', space=vmem, size = 0x8000, scoped, tag = 'input window, operand 0']
    #allocation3 [shape = 's32[2]{0}', space=sflag, size = 0x8, scoped, tag = 'scoped memory for tpu_custom_call.1']
    #allocation4 [shape = 's32[2]{0}', space=sflag, size = 0x8, scoped, tag = 'scoped memory for tpu_custom_call.1']
    #allocation5 [shape = 'u8[16384]{0}', space=vmem, size = 0x4000, scoped, tag = 'input window, operand 1, single buffered']
    #allocation6 [shape = 's32[1]{0}', space=sflag, size = 0x4, scoped, tag = 'scoped memory for tpu_custom_call.1']
    #allocation7 [shape = 'u8[8192]{0}', space=vmem, size = 0x2000, scoped, tag = 'output window, operand 0']
    %8 = vsyncpa [#allocation3], 0
    %s9 = scalar_lea.sflag [#allocation3], 1
    %10 = vsyncpa %s9, 0
    %11 = vsyncpa [#allocation6], 0
    %12 = vsyncpa [#allocation4], 0
    %s13 = scalar_lea.sflag [#allocation4], 1
    %14 = vsyncpa %s13, 0
    loop: start=0, step=1, limit=6
    $region2: #{tpu_custom_call.1} parent=1 // loop_pre_header
      _
    $region3: #{tpu_custom_call.1} parent=1 // loop_header
      %s16 = sphi 0, %s20
      %p17 = scmp.ge.s32.totalorder %s16, 6
      %s23 = sphi 0, %s35
      %s24 = sphi 0, %s31
      %s25 = sphi 0, %s23
      %s26 = sphi 0, %s24
      %s27 = sphi 0, %s25
      %s28 = sphi 0, %s26
      %s40 = sphi 0, %s42
      %s43 = sphi 0, %s40
      %s44 = sphi 0, %s43
      %s60 = sphi 0, %s44
      %s64 = sphi 0, %s64
      %s66 = sphi 0, %s64
      %s67 = sphi 0, %s66
      %s81 = sphi 0, %s67
      %s85 = sphi 0, %s85
      %s87 = sphi 0, %s85
      %s88 = sphi 0, %s87
      %s102 = sphi 0, %s88
      %s110 = sphi 0, %s112
      %s113 = sphi 0, %s110
      %s114 = sphi 0, %s113
      %s130 = sphi 0, %s114
    $region4: #{tpu_custom_call.1} parent=1 // loop_header_branch
      %19 = sbr.rel (%p17) target = $region8
    $region5: #{tpu_custom_call.1} parent=1 // loop_body
      %s21 = ssub.s32 %s16, 1
      %s22 = ssub.s32 %s16, 2
      %s29 = sadd.s32 1, %s24
      %p30 = scmp.ge.s32.totalorder %s29, 2
      %s31 = scalar_select %p30, 0, %s29
      %s32 = sadd.s32 1, %s23
      %s33 = scalar_select %p30, %s32, %s23
      %p34 = scmp.ge.s32.totalorder %s33, 2
      %s35 = scalar_select %p34, 0, %s33
      %s36 = ssub.s32 %s23, %s35
      %s37 = ssub.s32 %s24, %s31
      %s38 = sor.u32 %s36, %s37
      %p39 = scmp.eq.s32.totalorder %s38, 0
      %s41 = sadd.s32 %s40, 1
      %s42 = scalar_select %p39, %s40, %s41
      %p45 = pneg %p39
      %p46 = scmp.eq.s32.totalorder %s16, 3
      %p47 = por %p45, %p46
      %p48 = scmp.ne.s32.totalorder %s40, %s43
      %p49 = scmp.eq.s32.totalorder %s16, 0
      %p50 = por %p48, %p49
      %p51 = scmp.ne.s32.totalorder %s40, %s43
      %p52 = scmp.eq.s32.totalorder %s21, 3
      %p53 = por %p51, %p52
      %p54 = scmp.ne.s32.totalorder %s43, %s44
      %p55 = scmp.eq.s32.totalorder %s21, 0
      %p56 = por %p54, %p55
      %p57 = scmp.ne.s32.totalorder %s43, %s44
      %p58 = scmp.eq.s32.totalorder %s22, 3
      %p59 = por %p57, %p58
      %p61 = scmp.ne.s32.totalorder %s44, %s60
      %p62 = scmp.eq.s32.totalorder %s22, 0
      %p63 = por %p61, %p62
      %s65 = sadd.s32 %s64, 1
      %p68 = scmp.eq.s32.totalorder %s16, 3
      %p69 = scmp.ne.s32.totalorder %s64, %s66
      %p70 = scmp.eq.s32.totalorder %s16, 0
      %p71 = por %p69, %p70
      %p72 = scmp.ne.s32.totalorder %s64, %s66
      %p73 = scmp.eq.s32.totalorder %s21, 3
      %p74 = por %p72, %p73
      %p75 = scmp.ne.s32.totalorder %s66, %s67
      %p76 = scmp.eq.s32.totalorder %s21, 0
      %p77 = por %p75, %p76
      %p78 = scmp.ne.s32.totalorder %s66, %s67
      %p79 = scmp.eq.s32.totalorder %s22, 3
      %p80 = por %p78, %p79
      %p82 = scmp.ne.s32.totalorder %s67, %s81
      %p83 = scmp.eq.s32.totalorder %s22, 0
      %p84 = por %p82, %p83
      %s86 = sadd.s32 %s85, 1
      %p89 = scmp.eq.s32.totalorder %s16, 3
      %p90 = scmp.ne.s32.totalorder %s85, %s87
      %p91 = scmp.eq.s32.totalorder %s16, 0
      %p92 = por %p90, %p91
      %p93 = scmp.ne.s32.totalorder %s85, %s87
      %p94 = scmp.eq.s32.totalorder %s21, 3
      %p95 = por %p93, %p94
      %p96 = scmp.ne.s32.totalorder %s87, %s88
      %p97 = scmp.eq.s32.totalorder %s21, 0
      %p98 = por %p96, %p97
      %p99 = scmp.ne.s32.totalorder %s87, %s88
      %p100 = scmp.eq.s32.totalorder %s22, 3
      %p101 = por %p99, %p100
      %p103 = scmp.ne.s32.totalorder %s88, %s102
      %p104 = scmp.eq.s32.totalorder %s22, 0
      %p105 = por %p103, %p104
      %s106 = ssub.s32 %s23, %s35
      %s107 = ssub.s32 %s24, %s31
      %s108 = sor.u32 %s106, %s107
      %p109 = scmp.eq.s32.totalorder %s108, 0
      %s111 = sadd.s32 %s110, 1
      %s112 = scalar_select %p109, %s110, %s111
      %p115 = pneg %p109
      %p116 = scmp.eq.s32.totalorder %s16, 3
      %p117 = por %p115, %p116
      %p118 = scmp.ne.s32.totalorder %s110, %s113
      %p119 = scmp.eq.s32.totalorder %s16, 0
      %p120 = por %p118, %p119
      %p121 = scmp.ne.s32.totalorder %s110, %s113
      %p122 = scmp.eq.s32.totalorder %s21, 3
      %p123 = por %p121, %p122
      %p124 = scmp.ne.s32.totalorder %s113, %s114
      %p125 = scmp.eq.s32.totalorder %s21, 0
      %p126 = por %p124, %p125
      %p127 = scmp.ne.s32.totalorder %s113, %s114
      %p128 = scmp.eq.s32.totalorder %s22, 3
      %p129 = por %p127, %p128
      %p131 = scmp.ne.s32.totalorder %s114, %s130
      %p132 = scmp.eq.s32.totalorder %s22, 0
      %p133 = por %p131, %p132
      %p134 = scmp.le.s32.totalorder 1, %s16
      %p135 = scmp.lt.s32.totalorder %s16, 5
      %p136 = pnand %p134, %p135
      %p137 = pneg %p136
      // Predicated region
      $region9: #{tpu_custom_call.1} parent=5 // pred_check
        _
      $region10: #{tpu_custom_call.1} parent=5 // pred_check_branch
        %139 = sbr.rel (%p136) target = $region12
      $region11: #{tpu_custom_call.1} parent=5 // pred_region
        %s140 = ssub.s32 %s16, 1
        // Predicated region
        $region13: #{tpu_custom_call.1} parent=11 // pred_check
          %p141 = pneg %p77
        $region14: #{tpu_custom_call.1} parent=11 // pred_check_branch
          %143 = sbr.rel (%p141) target = $region16
        $region15: #{tpu_custom_call.1} parent=11 // pred_region
          %s145 = ssub.s32 512, 512
          %146 = vsyncadd [#allocation6], %s145
          %s147 = sshll.u32 [#allocation5], 4
          %s148 = int_to_ptr.vmem [resolvable:$true] %s147
          %153 = dma.hbm_to_vmem [thread:$0]  %s1, 512, %s148, [#allocation6], 64, 64, 4
        $region16: #{tpu_custom_call.1} parent=11 // pred_fallthru
          _
        // Predicated region
        $region17: #{tpu_custom_call.1} parent=11 // pred_check
          %p154 = pneg %p98
        $region18: #{tpu_custom_call.1} parent=11 // pred_check_branch
          %156 = sbr.rel (%p154) target = $region20
        $region19: #{tpu_custom_call.1} parent=11 // pred_region
          _
        $region20: #{tpu_custom_call.1} parent=11 // pred_fallthru
          _
      $region12: #{tpu_custom_call.1} parent=5 // pred_fallthru
        _
      %p157 = scmp.lt.s32.totalorder %s16, 4
      // Predicated region
      $region21: #{tpu_custom_call.1} parent=5 // pred_check
        %p158 = pneg %p157
      $region22: #{tpu_custom_call.1} parent=5 // pred_check_branch
        %160 = sbr.rel (%p158) target = $region24
      $region23: #{tpu_custom_call.1} parent=5 // pred_region
        // Predicated region
        $region25: #{tpu_custom_call.1} parent=23 // pred_check
          %p161 = pneg %p50
        $region26: #{tpu_custom_call.1} parent=23 // pred_check_branch
          %163 = sbr.rel (%p161) target = $region28
        $region27: #{tpu_custom_call.1} parent=23 // pred_region
          %s164 = sand.u32 %s40, 1
          %s165 = scalar_lea.sflag [#allocation3], %s164
          %s166 = sand.u32 %s40, 1
          %s167 = smul.addr %s166, 32
          %s168 = scalar_lea.vmem [#allocation2], %s167
          %s170 = ssub.s32 512, 512
          %171 = vsyncadd %s165, %s170
          %s172 = smul.addr %s23, 8
          %s173 = sadd.s32 %s24, %s172
          %s174 = smul.addr %s173, 128
          %s175 = scalar_lea.hbm %s0, %s174
          %s176 = sshll.u32 %s168, 4
          %s177 = int_to_ptr.vmem [resolvable:$true] %s176
          %182 = dma.hbm_to_vmem [thread:$0]  %s175, 512, %s177, %s165, 256, 128, 8
        $region28: #{tpu_custom_call.1} parent=23 // pred_fallthru
          _
      $region24: #{tpu_custom_call.1} parent=5 // pred_fallthru
        _
      %p183 = scmp.le.s32.totalorder 1, %s16
      %p184 = scmp.lt.s32.totalorder %s16, 5
      %p185 = pnand %p183, %p184
      %p186 = pneg %p185
      // Predicated region
      $region29: #{tpu_custom_call.1} parent=5 // pred_check
        _
      $region30: #{tpu_custom_call.1} parent=5 // pred_check_branch
        %188 = sbr.rel (%p185) target = $region32
      $region31: #{tpu_custom_call.1} parent=5 // pred_region
        %s189 = ssub.s32 %s16, 1
        %s190 = sand.u32 %s43, 1
        %s191 = scalar_lea.sflag [#allocation3], %s190
        %s192 = sand.u32 %s43, 1
        %s193 = smul.addr %s192, 32
        %s194 = scalar_lea.vmem [#allocation2], %s193
        // Predicated region
        $region33: #{tpu_custom_call.1} parent=31 // pred_check
          %p195 = pneg %p56
        $region34: #{tpu_custom_call.1} parent=31 // pred_check_branch
          %197 = sbr.rel (%p195) target = $region36
        $region35: #{tpu_custom_call.1} parent=31 // pred_region
          %198 = dma.done %s191, 512
        $region36: #{tpu_custom_call.1} parent=31 // pred_fallthru
          _
        // Predicated region
        $region37: #{tpu_custom_call.1} parent=31 // pred_check
          %p199 = pneg %p77
        $region38: #{tpu_custom_call.1} parent=31 // pred_check_branch
          %201 = sbr.rel (%p199) target = $region40
        $region39: #{tpu_custom_call.1} parent=31 // pred_region
          %202 = dma.done [#allocation6], 512
        $region40: #{tpu_custom_call.1} parent=31 // pred_fallthru
          _
        %s203 = sand.u32 %s43, 1
        %s204 = scalar_lea.sflag [#allocation3], %s203
        %s205 = sand.u32 %s43, 1
        %s206 = smul.addr %s205, 32
        %s207 = scalar_lea.vmem [#allocation2], %s206
        %p208 = pneg %p56
        %p209 = pneg %p53
        %p210 = pneg %p77
        %p211 = pneg %p74
        %p212 = pneg %p98
        %p213 = pneg %p95
        %p214 = pneg %p126
        %p215 = pneg %p123
        %s216 = sand.u32 %s113, 1
        %s217 = scalar_lea.sflag [#allocation4], %s216
        %s218 = sand.u32 %s113, 1
        %s219 = smul.addr %s218, 8
        %s220 = scalar_lea.vmem [#allocation7], %s219
        %v222 = vld [vmem:[%s194] sm:$0xff]
        %v223 = vpack.c.bf16 %v222, %v222
        %v224 = vld [vmem:[#allocation5] sm:$0xf]
        %v225 = vld [vmem:[#allocation5 + $0x4] sm:$0xf]
        %s226 = scalar_lea.vmem %s194, 8 [#allocation2]
        %v227 = vld [vmem:[%s226] sm:$0xff]
        %v228 = vpack.c.bf16 %v227, %v227
        %s229 = scalar_lea.vmem [#allocation5], 8
        %v230 = vld [vmem:[%s229] sm:$0xf]
        %v231 = vld [vmem:[%s229 + $0x4] sm:$0xf]
        %v234 = vunpack.c.l.b16 %v230
        %v235 = vunpack.c.l.b16 %v231
        %v236 = vpack.c.b16 %v235, %v234
        %vm238 = vcmask 130048
        %v240 = vsel %vm238, %v228, 0
        %242 = vmatprep.subr.bf16.mxu0 0
        %243 = vmatpush1.bf16.msra.mxu0 %v236
        %244 = vmatprep.subr.bf16.mxu0 0
        %245 = vmatpush1.bf16.msra.mxu0 0
        %246 = vmatprep.subr.bf16.mxu0 0
        %247 = vmatpush1.bf16.msra.mxu0 0
        %248 = vmatprep.subr.bf16.mxu0 0
        %249 = vmatpush1.bf16.msra.mxu0 0
        %250 = vmatprep.subr.bf16.mxu0 0
        %251 = vmatpush1.bf16.msra.mxu0 0
        %252 = vmatprep.subr.bf16.mxu0 0
        %253 = vmatpush1.bf16.msra.mxu0 0
        %254 = vmatprep.subr.bf16.mxu0 0
        %255 = vmatpush1.bf16.msra.mxu0 0
        %256 = vmatprep.subr.bf16.mxu0 0
        %257 = vmatpush1.bf16.msra.mxu0 0
        %258 = vmatprep.subr.bf16.mxu0 0
        %259 = vmatpush1.bf16.msra.mxu0 0
        %260 = vmatprep.subr.bf16.mxu0 0
        %261 = vmatpush1.bf16.msra.mxu0 0
        %262 = vmatprep.subr.bf16.mxu0 0
        %263 = vmatpush1.bf16.msra.mxu0 0
        %264 = vmatprep.subr.bf16.mxu0 0
        %265 = vmatpush1.bf16.msra.mxu0 0
        %266 = vmatprep.subr.bf16.mxu0 0
        %267 = vmatpush1.bf16.msra.mxu0 0
        %268 = vmatprep.subr.bf16.mxu0 0
        %269 = vmatpush1.bf16.msra.mxu0 0
        %270 = vmatprep.subr.bf16.mxu0 0
        %271 = vmatpush1.bf16.msra.mxu0 0
        %272 = vmatprep.subr.bf16.mxu0 0
        %273 = vmatpush1.bf16.msra.mxu0 0
        %274 = vmatprep.mubr.bf16.mxu0 0
        %275 = vmatmul.mubr.bf16.gmra.mrb[0].mxu0 %v240
        %v276 = vpop.f32.mrb[0].mxu0
        %v277 = vadd.f32 0.0, %v276
        %v278 = vpop.f32.mrb[0].mxu0
        %v279 = vpop.f32.mrb[0].mxu0
        %v280 = vpop.f32.mrb[0].mxu0
        %281 = vdwg.mxu0
        %v284 = vunpack.c.l.b16 %v224
        %v285 = vunpack.c.l.b16 %v225
        %v286 = vpack.c.b16 %v285, %v284
        %v289 = vsel %vm238, %v223, 0
        %291 = vmatprep.subr.bf16.mxu0 0
        %292 = vmatpush1.bf16.msra.mxu0 %v286
        %293 = vmatprep.subr.bf16.mxu0 0
        %294 = vmatpush1.bf16.msra.mxu0 0
        %295 = vmatprep.subr.bf16.mxu0 0
        %296 = vmatpush1.bf16.msra.mxu0 0
        %297 = vmatprep.subr.bf16.mxu0 0
        %298 = vmatpush1.bf16.msra.mxu0 0
        %299 = vmatprep.subr.bf16.mxu0 0
        %300 = vmatpush1.bf16.msra.mxu0 0
        %301 = vmatprep.subr.bf16.mxu0 0
        %302 = vmatpush1.bf16.msra.mxu0 0
        %303 = vmatprep.subr.bf16.mxu0 0
        %304 = vmatpush1.bf16.msra.mxu0 0
        %305 = vmatprep.subr.bf16.mxu0 0
        %306 = vmatpush1.bf16.msra.mxu0 0
        %307 = vmatprep.subr.bf16.mxu0 0
        %308 = vmatpush1.bf16.msra.mxu0 0
        %309 = vmatprep.subr.bf16.mxu0 0
        %310 = vmatpush1.bf16.msra.mxu0 0
        %311 = vmatprep.subr.bf16.mxu0 0
        %312 = vmatpush1.bf16.msra.mxu0 0
        %313 = vmatprep.subr.bf16.mxu0 0
        %314 = vmatpush1.bf16.msra.mxu0 0
        %315 = vmatprep.subr.bf16.mxu0 0
        %316 = vmatpush1.bf16.msra.mxu0 0
        %317 = vmatprep.subr.bf16.mxu0 0
        %318 = vmatpush1.bf16.msra.mxu0 0
        %319 = vmatprep.subr.bf16.mxu0 0
        %320 = vmatpush1.bf16.msra.mxu0 0
        %321 = vmatprep.subr.bf16.mxu0 0
        %322 = vmatpush1.bf16.msra.mxu0 0
        %323 = vmatprep.mubr.bf16.mxu0 0
        %324 = vmatmul.mubr.bf16.gmra.mrb[0].mxu0 %v289
        %v325 = vpop.f32.mrb[0].mxu0
        %v326 = vadd.f32 %v277, %v325
        %v327 = vpop.f32.mrb[0].mxu0
        %v328 = vpop.f32.mrb[0].mxu0
        %v329 = vpop.f32.mrb[0].mxu0
        %330 = vdwg.mxu0
        %s331 = scalar_lea.vmem %s194, 16 [#allocation2]
        %v332 = vld [vmem:[%s331] sm:$0xff]
        %v333 = vpack.c.bf16 %v332, %v332
        %s334 = scalar_lea.vmem [#allocation5], 16
        %v335 = vld [vmem:[%s334] sm:$0xf]
        %v336 = vld [vmem:[%s334 + $0x4] sm:$0xf]
        %v339 = vunpack.c.l.b16 %v335
        %v340 = vunpack.c.l.b16 %v336
        %v341 = vpack.c.b16 %v340, %v339
        %v344 = vsel %vm238, %v333, 0
        %346 = vmatprep.subr.bf16.mxu0 0
        %347 = vmatpush1.bf16.msra.mxu0 %v341
        %348 = vmatprep.subr.bf16.mxu0 0
        %349 = vmatpush1.bf16.msra.mxu0 0
        %350 = vmatprep.subr.bf16.mxu0 0
        %351 = vmatpush1.bf16.msra.mxu0 0
        %352 = vmatprep.subr.bf16.mxu0 0
        %353 = vmatpush1.bf16.msra.mxu0 0
        %354 = vmatprep.subr.bf16.mxu0 0
        %355 = vmatpush1.bf16.msra.mxu0 0
        %356 = vmatprep.subr.bf16.mxu0 0
        %357 = vmatpush1.bf16.msra.mxu0 0
        %358 = vmatprep.subr.bf16.mxu0 0
        %359 = vmatpush1.bf16.msra.mxu0 0
        %360 = vmatprep.subr.bf16.mxu0 0
        %361 = vmatpush1.bf16.msra.mxu0 0
        %362 = vmatprep.subr.bf16.mxu0 0
        %363 = vmatpush1.bf16.msra.mxu0 0
        %364 = vmatprep.subr.bf16.mxu0 0
        %365 = vmatpush1.bf16.msra.mxu0 0
        %366 = vmatprep.subr.bf16.mxu0 0
        %367 = vmatpush1.bf16.msra.mxu0 0
        %368 = vmatprep.subr.bf16.mxu0 0
        %369 = vmatpush1.bf16.msra.mxu0 0
        %370 = vmatprep.subr.bf16.mxu0 0
        %371 = vmatpush1.bf16.msra.mxu0 0
        %372 = vmatprep.subr.bf16.mxu0 0
        %373 = vmatpush1.bf16.msra.mxu0 0
        %374 = vmatprep.subr.bf16.mxu0 0
        %375 = vmatpush1.bf16.msra.mxu0 0
        %376 = vmatprep.subr.bf16.mxu0 0
        %377 = vmatpush1.bf16.msra.mxu0 0
        %378 = vmatprep.mubr.bf16.mxu0 0
        %379 = vmatmul.mubr.bf16.gmra.mrb[0].mxu0 %v344
        %v380 = vpop.f32.mrb[0].mxu0
        %v381 = vadd.f32 0.0, %v380
        %v382 = vpop.f32.mrb[0].mxu0
        %v383 = vpop.f32.mrb[0].mxu0
        %v384 = vpop.f32.mrb[0].mxu0
        %385 = vdwg.mxu0
        %v386 = vadd.f32 %v326, %v381
        %s387 = scalar_lea.vmem %s194, 24 [#allocation2]
        %v388 = vld [vmem:[%s387] sm:$0xff]
        %v389 = vpack.c.bf16 %v388, %v388
        %s390 = scalar_lea.vmem [#allocation5], 24
        %v391 = vld [vmem:[%s390] sm:$0xf]
        %v392 = vld [vmem:[%s390 + $0x4] sm:$0xf]
        %v395 = vunpack.c.l.b16 %v391
        %v396 = vunpack.c.l.b16 %v392
        %v397 = vpack.c.b16 %v396, %v395
        %v400 = vsel %vm238, %v389, 0
        %402 = vmatprep.subr.bf16.mxu0 0
        %403 = vmatpush1.bf16.msra.mxu0 %v397
        %404 = vmatprep.subr.bf16.mxu0 0
        %405 = vmatpush1.bf16.msra.mxu0 0
        %406 = vmatprep.subr.bf16.mxu0 0
        %407 = vmatpush1.bf16.msra.mxu0 0
        %408 = vmatprep.subr.bf16.mxu0 0
        %409 = vmatpush1.bf16.msra.mxu0 0
        %410 = vmatprep.subr.bf16.mxu0 0
        %411 = vmatpush1.bf16.msra.mxu0 0
        %412 = vmatprep.subr.bf16.mxu0 0
        %413 = vmatpush1.bf16.msra.mxu0 0
        %414 = vmatprep.subr.bf16.mxu0 0
        %415 = vmatpush1.bf16.msra.mxu0 0
        %416 = vmatprep.subr.bf16.mxu0 0
        %417 = vmatpush1.bf16.msra.mxu0 0
        %418 = vmatprep.subr.bf16.mxu0 0
        %419 = vmatpush1.bf16.msra.mxu0 0
        %420 = vmatprep.subr.bf16.mxu0 0
        %421 = vmatpush1.bf16.msra.mxu0 0
        %422 = vmatprep.subr.bf16.mxu0 0
        %423 = vmatpush1.bf16.msra.mxu0 0
        %424 = vmatprep.subr.bf16.mxu0 0
        %425 = vmatpush1.bf16.msra.mxu0 0
        %426 = vmatprep.subr.bf16.mxu0 0
        %427 = vmatpush1.bf16.msra.mxu0 0
        %428 = vmatprep.subr.bf16.mxu0 0
        %429 = vmatpush1.bf16.msra.mxu0 0
        %430 = vmatprep.subr.bf16.mxu0 0
        %431 = vmatpush1.bf16.msra.mxu0 0
        %432 = vmatprep.subr.bf16.mxu0 0
        %433 = vmatpush1.bf16.msra.mxu0 0
        %434 = vmatprep.mubr.bf16.mxu0 0
        %435 = vmatmul.mubr.bf16.gmra.mrb[0].mxu0 %v400
        %v436 = vpop.f32.mrb[0].mxu0
        %v437 = vadd.f32 0.0, %v436
        %v438 = vpop.f32.mrb[0].mxu0
        %v439 = vpop.f32.mrb[0].mxu0
        %v440 = vpop.f32.mrb[0].mxu0
        %441 = vdwg.mxu0
        %v442 = vadd.f32 %v386, %v437
        %v443 = vld [vmem:[%s2] sm:$0x1]
        %v445 = vlaneseq
        %v446 = vshrl.u32 %v445, 7
        %v447 = vsub.s32 0, %v446
        %v448 = vrot.slane %v443, %v447
        %v450 = vadd.f32 %v442, %v448
        %451 = vst [vmem:[%s220] sm:$0xff] %v450
        %s452 = sand.u32 %s113, 1
        %s453 = scalar_lea.sflag [#allocation4], %s452
        %s454 = sand.u32 %s113, 1
        %s455 = smul.addr %s454, 8
        %s456 = scalar_lea.vmem [#allocation7], %s455
        // Predicated region
        $region41: #{tpu_custom_call.1} parent=31 // pred_check
          %p457 = pneg %p123
        $region42: #{tpu_custom_call.1} parent=31 // pred_check_branch
          %459 = sbr.rel (%p457) target = $region44
        $region43: #{tpu_custom_call.1} parent=31 // pred_region
          %s461 = ssub.s32 128, 128
          %462 = vsyncadd %s453, %s461
          %s463 = smul.addr %s25, 2
          %s464 = sadd.s32 %s26, %s463
          %s465 = smul.addr %s464, 128
          %s466 = scalar_lea.hbm %s3, %s465
          %s468 = sshll.u32 %s456, 4
          %s469 = int_to_ptr.vmem [resolvable:$true] %s468
          %471 = dma.vmem_to_hbm [thread:$0]  %s469, 128, %s466, %s453
        $region44: #{tpu_custom_call.1} parent=31 // pred_fallthru
          _
      $region32: #{tpu_custom_call.1} parent=5 // pred_fallthru
        _
      %p472 = scmp.le.s32.totalorder 2, %s16
      // Predicated region
      $region45: #{tpu_custom_call.1} parent=5 // pred_check
        %p473 = pneg %p472
      $region46: #{tpu_custom_call.1} parent=5 // pred_check_branch
        %475 = sbr.rel (%p473) target = $region48
      $region47: #{tpu_custom_call.1} parent=5 // pred_region
        %s476 = ssub.s32 %s16, 2
        // Predicated region
        $region49: #{tpu_custom_call.1} parent=47 // pred_check
          %p477 = pneg %p129
        $region50: #{tpu_custom_call.1} parent=47 // pred_check_branch
          %479 = sbr.rel (%p477) target = $region52
        $region51: #{tpu_custom_call.1} parent=47 // pred_region
          %s480 = sand.u32 %s114, 1
          %s481 = scalar_lea.sflag [#allocation4], %s480
          %s482 = sand.u32 %s114, 1
          %s483 = smul.addr %s482, 8
          %s484 = scalar_lea.vmem [#allocation7], %s483
          %485 = dma.done %s481, 128
        $region52: #{tpu_custom_call.1} parent=47 // pred_fallthru
          _
      $region48: #{tpu_custom_call.1} parent=5 // pred_fallthru
        _
    $region6: #{tpu_custom_call.1} parent=1 // loop_footer
      %s20 = sadd.s32 1, %s16
    $region7: #{tpu_custom_call.1} parent=1 // loop_footer_branch
      %15 = sbr.rel target = $region3
    $region8: #{tpu_custom_call.1} parent=1 // loop_exit
      _
    %486 = vsyncpa [#allocation3], 1
    %s487 = scalar_lea.sflag [#allocation3], 1
    %488 = vsyncpa %s487, 1
    %489 = vsyncpa [#allocation6], 1
    %490 = vsyncpa [#allocation4], 1
    %s491 = scalar_lea.sflag [#allocation4], 1
    %492 = vsyncpa %s491, 1

</llo_original>
